<compile_context>
chip_gen: v5e
topology: v5e:2x2
jax: 0.10.0
libtpu: 0.0.40
codegen_flags: <defaults>
</compile_context>

<pallas_src>
import functools

import jax
import jax.numpy as jnp
from jax.experimental import pallas as pl
from jax.experimental.pallas import tpu as pltpu

_LANE = 128


def _mila_kernel(x_ref, o_ref, *, beta):
    x = x_ref[...].astype(jnp.float32)
    z = x + beta
    # tanh(softplus(z)) = (e^{2z} + 2e^z) / (e^{2z} + 2e^z + 2)
    # Stable form with u = exp(-|z|) <= 1  (one EUP transcendental total):
    #   z >= 0:  (1   + 2u) / (1   + 2u + 2u^2)
    #   z <  0:  (u^2 + 2u) / (u^2 + 2u + 2)
    u = jnp.exp(-jnp.abs(z))
    u2 = u * u
    two_u = 2.0 * u
    pos = z >= 0.0
    num = jnp.where(pos, 1.0 + two_u, u2 + two_u)
    den = num + jnp.where(pos, 2.0 * u2, 2.0)
    # Exact divide keeps full f32 accuracy (passes 1e-5 check vs. the
    # log1p/exp/tanh reference).  If ~1e-3 relative error is acceptable,
    # pl.reciprocal(den, approx=True) * num saves the Newton-refined divide.
    t = num / den
    o_ref[...] = (x * t).astype(o_ref.dtype)


def mila(x, beta=-0.25, *, block_rows=1024):
    """Elementwise Mila activation via a Pallas TPU kernel.

    x: any shape / float dtype. Returns same shape/dtype.
    """
    orig_shape = x.shape
    orig_dtype = x.dtype
    n = x.size
    if n == 0:
        return x

    if n % _LANE != 0:
        # Rare for NCHW activations; pad only to the next multiple of 128
        # (<= 127 zeros) and strip the tail afterwards.
        # TODO(synk): mask the tail in-kernel (scalar-prefetch length) to
        # drop even this small pad/slice copy.
        pad = _LANE - (n % _LANE)
        x_flat = jnp.concatenate(
            [jnp.ravel(x), jnp.zeros((pad,), dtype=orig_dtype)]
        )
    else:
        pad = 0
        x_flat = jnp.ravel(x)  # free reshape, no copy / no tile-sized padding

    rows = x_flat.size // _LANE
    x2d = x_flat.reshape(rows, _LANE)

    # Tile sizing: big lane-dense blocks (mem-bound elementwise; per-step
    # overhead ~0.35 us), but keep the grid >= 2 where possible so a
    # "parallel" axis can shard across both v7x TensorCores.
    half_rows = pl.cdiv(rows, 2)
    half_rows = ((half_rows + 7) // 8) * 8          # sublane multiple
    block = max(8, min(block_rows, half_rows))
    # Cap at 4096 rows: f32 tile = 2 MiB, double-buffered in+out = 8 MiB,
    # comfortably inside v5e's 16 MiB default scoped VMEM (and v7x's 64 MiB
    # per-core VMEM) without needing vmem_limit_bytes.
    block = min(block, 4096)
    grid = (pl.cdiv(rows, block),)                   # partial last block OK

    itemsize = jnp.dtype(orig_dtype).itemsize
    cost = pl.CostEstimate(
        flops=10 * n,                 # abs/add/mul/select chain per element
        transcendentals=n,            # one exp per element
        bytes_accessed=2 * n * itemsize,
    )

    out2d = pl.pallas_call(
        functools.partial(_mila_kernel, beta=float(beta)),
        out_shape=jax.ShapeDtypeStruct((rows, _LANE), orig_dtype),
        grid_spec=pl.GridSpec(
            grid=grid,
            in_specs=[pl.BlockSpec((block, _LANE), lambda i: (i, 0))],
            out_specs=pl.BlockSpec((block, _LANE), lambda i: (i, 0)),
        ),
        compiler_params=pltpu.CompilerParams(
            dimension_semantics=("parallel",),
        ),
        cost_estimate=cost,
    )(x2d)

    out_flat = out2d.reshape(-1)
    if pad:
        out_flat = out_flat[:n]
    return out_flat.reshape(orig_shape)


def _mila_ref(x, beta=-0.25):
    x32 = x.astype(jnp.float32)
    return (x32 * jnp.tanh(jax.nn.softplus(x32 + beta))).astype(x.dtype)


if __name__ == "__main__":
    key = jax.random.PRNGKey(0)

    # NCHW input, like the PyTorch module (n % 128 == 0 -> zero-copy path).
    x = jax.random.normal(key, (2, 4, 16, 16), dtype=jnp.float32)
    y = jax.block_until_ready(mila(x))
    y_ref = _mila_ref(x)
    assert y.shape == x.shape and y.dtype == x.dtype
    assert jnp.allclose(y, y_ref, atol=1e-5, rtol=1e-5), (
        float(jnp.max(jnp.abs(y - y_ref)))
    )

    # Non-128-aligned size exercises the small-pad fallback + partial block.
    x2 = jax.random.normal(jax.random.PRNGKey(1), (2, 3, 17, 16),
                           dtype=jnp.float32)
    y2 = jax.block_until_ready(mila(x2))
    y2_ref = _mila_ref(x2)
    assert y2.shape == x2.shape and y2.dtype == x2.dtype
    assert jnp.allclose(y2, y2_ref, atol=1e-5, rtol=1e-5), (
        float(jnp.max(jnp.abs(y2 - y2_ref)))
    )

    print("KERNEL_OK")
</pallas_src>

<mosaic_0001>
module attributes {stable_mosaic.version = 11 : i64} {
  func.func @_mila_kernel(%arg0: i32, %arg1: memref<8x128xf32, #tpu.memory_space<vmem>>, %arg2: memref<8x128xf32, #tpu.memory_space<vmem>>) attributes {dimension_semantics = [#tpu.dimension_semantics<parallel>], iteration_bounds = array<i64: 2>, scalar_prefetch = 0 : i64, scratch_operands = 0 : i64, tpu.core_type = #tpu.core_type<tc>, window_params = [{transform_indices = @transform_0, window_bounds = array<i64: 8, 128>}, {transform_indices = @transform_1, window_bounds = array<i64: 8, 128>}]} {
    %c0 = arith.constant 0 : index
    %c0_0 = arith.constant 0 : index
    %0 = vector.load %arg1[%c0, %c0_0] : memref<8x128xf32, #tpu.memory_space<vmem>>, vector<8x128xf32>
    %cst = arith.constant -2.500000e-01 : f32
    %1 = vector.broadcast %cst : f32 to vector<8x128xf32>
    %2 = arith.addf %0, %1 : vector<8x128xf32>
    %3 = math.absf %2 : vector<8x128xf32>
    %cst_1 = arith.constant 0.000000e+00 : f32
    %4 = vector.broadcast %cst_1 : f32 to vector<8x128xf32>
    %5 = arith.subf %4, %3 : vector<8x128xf32>
    %6 = math.exp %5 : vector<8x128xf32>
    %7 = arith.mulf %6, %6 : vector<8x128xf32>
    %cst_2 = arith.constant 2.000000e+00 : f32
    %8 = vector.broadcast %cst_2 : f32 to vector<8x128xf32>
    %9 = arith.mulf %8, %6 : vector<8x128xf32>
    %cst_3 = arith.constant 0.000000e+00 : f32
    %10 = vector.broadcast %cst_3 : f32 to vector<8x128xf32>
    %11 = arith.cmpf oge, %2, %10 : vector<8x128xf32>
    %cst_4 = arith.constant 1.000000e+00 : f32
    %12 = vector.broadcast %cst_4 : f32 to vector<8x128xf32>
    %13 = arith.addf %12, %9 : vector<8x128xf32>
    %14 = arith.addf %7, %9 : vector<8x128xf32>
    %15 = arith.select %11, %13, %14 : vector<8x128xi1>, vector<8x128xf32>
    %cst_5 = arith.constant 2.000000e+00 : f32
    %16 = vector.broadcast %cst_5 : f32 to vector<8x128xf32>
    %17 = arith.mulf %16, %7 : vector<8x128xf32>
    %cst_6 = arith.constant 2.000000e+00 : f32
    %18 = vector.broadcast %cst_6 : f32 to vector<8x128xf32>
    %19 = arith.select %11, %17, %18 : vector<8x128xi1>, vector<8x128xf32>
    %20 = arith.addf %15, %19 : vector<8x128xf32>
    %21 = arith.divf %15, %20 : vector<8x128xf32>
    %22 = arith.mulf %0, %21 : vector<8x128xf32>
    %c0_7 = arith.constant 0 : index
    %c0_8 = arith.constant 0 : index
    %23 = vector.load %arg2[%c0_7, %c0_8] : memref<8x128xf32, #tpu.memory_space<vmem>>, vector<8x128xf32>
    tpu.vector_store %arg2[%c0_7, %c0_8], %22 {strides = array<i32>} : memref<8x128xf32, #tpu.memory_space<vmem>>, vector<8x128xf32>,
    return
  }
  func.func @transform_0(%arg0: i32) -> (i32, i32) {
    %c0_i32 = arith.constant 0 : i32
    %c0_i32_0 = arith.constant 0 : i32
    return %arg0, %c0_i32 : i32, i32
  }
  func.func @transform_1(%arg0: i32) -> (i32, i32) {
    %c0_i32 = arith.constant 0 : i32
    %c0_i32_0 = arith.constant 0 : i32
    return %arg0, %c0_i32 : i32, i32
  }
}

</mosaic_0001>

<llo_original>
// kernel: tpu_custom_call.1
$region0: #{tpu_custom_call.1}
  #allocation0 [shape = 'u32[]', space=smem, size = 0x4, offset = 0x4, fixed_abs, tag = 'smem constant byte address 0x4 - core index']
  #allocation1 [shape = 'u32[72,128]{1,0:T(1,128)}', space=vmem, size = 0x9000, scoped, tag = 'internal scratch']
  %s0 = inlined_call_operand.hbm [shape: f32[16,128], index: 0, kind: input, shape index: {}]
  %s1 = inlined_call_operand.hbm [shape: f32[16,128], index: 1, kind: output, shape index: {}]
  %s2 = sld [smem:[#allocation0]]
  $region41: #{tpu_custom_call.1} parent=0
    _
  %s4 = ssub.s32 1, %s2
  %s5 = scalar_select 0, %s4, %s2
  $region1: #{tpu_custom_call.1} parent=0
    #allocation2 [shape = 'u8[8192]{0}', space=vmem, size = 0x2000, scoped, tag = 'input window, operand 0']
    #allocation3 [shape = 's32[2]{0}', space=sflag, size = 0x8, scoped, tag = 'scoped memory for tpu_custom_call.1']
    #allocation4 [shape = 's32[2]{0}', space=sflag, size = 0x8, scoped, tag = 'scoped memory for tpu_custom_call.1']
    #allocation5 [shape = 'u8[8192]{0}', space=vmem, size = 0x2000, scoped, tag = 'output window, operand 0']
    %6 = vsyncpa [#allocation3], 0
    %s7 = scalar_lea.sflag [#allocation3], 1
    %8 = vsyncpa %s7, 0
    %9 = vsyncpa [#allocation4], 0
    %s10 = scalar_lea.sflag [#allocation4], 1
    %11 = vsyncpa %s10, 0
    loop: start=0, step=1, limit=4
    $region2: #{tpu_custom_call.1} parent=1 // loop_pre_header
      _
    $region3: #{tpu_custom_call.1} parent=1 // loop_header
      %s13 = sphi 0, %s17
      %p14 = scmp.ge.s32.totalorder %s13, 4
      %s23 = sphi 0, %s25
      %s26 = sphi 0, %s23
      %s27 = sphi 0, %s26
      %s43 = sphi 0, %s27
      %s49 = sphi 0, %s51
      %s52 = sphi 0, %s49
      %s53 = sphi 0, %s52
      %s69 = sphi 0, %s53
    $region4: #{tpu_custom_call.1} parent=1 // loop_header_branch
      %16 = sbr.rel (%p14) target = $region8
    $region5: #{tpu_custom_call.1} parent=1 // loop_body
      %s18 = ssub.s32 %s13, 1
      %s19 = ssub.s32 %s13, 2
      %s20 = sadd.s32 %s13, 1
      %s21 = ssub.s32 %s13, %s20
      %p22 = scmp.eq.s32.totalorder %s21, 0
      %s24 = sadd.s32 %s23, 1
      %s25 = scalar_select %p22, %s23, %s24
      %p28 = pneg %p22
      %p29 = scmp.eq.s32.totalorder %s13, 1
      %p30 = por %p28, %p29
      %p31 = scmp.ne.s32.totalorder %s23, %s26
      %p32 = scmp.eq.s32.totalorder %s13, 0
      %p33 = por %p31, %p32
      %p34 = scmp.ne.s32.totalorder %s23, %s26
      %p35 = scmp.eq.s32.totalorder %s18, 1
      %p36 = por %p34, %p35
      %p37 = scmp.ne.s32.totalorder %s26, %s27
      %p38 = scmp.eq.s32.totalorder %s18, 0
      %p39 = por %p37, %p38
      %p40 = scmp.ne.s32.totalorder %s26, %s27
      %p41 = scmp.eq.s32.totalorder %s19, 1
      %p42 = por %p40, %p41
      %p44 = scmp.ne.s32.totalorder %s27, %s43
      %p45 = scmp.eq.s32.totalorder %s19, 0
      %p46 = por %p44, %p45
      %s47 = ssub.s32 %s13, %s20
      %p48 = scmp.eq.s32.totalorder %s47, 0
      %s50 = sadd.s32 %s49, 1
      %s51 = scalar_select %p48, %s49, %s50
      %p54 = pneg %p48
      %p55 = scmp.eq.s32.totalorder %s13, 1
      %p56 = por %p54, %p55
      %p57 = scmp.ne.s32.totalorder %s49, %s52
      %p58 = scmp.eq.s32.totalorder %s13, 0
      %p59 = por %p57, %p58
      %p60 = scmp.ne.s32.totalorder %s49, %s52
      %p61 = scmp.eq.s32.totalorder %s18, 1
      %p62 = por %p60, %p61
      %p63 = scmp.ne.s32.totalorder %s52, %s53
      %p64 = scmp.eq.s32.totalorder %s18, 0
      %p65 = por %p63, %p64
      %p66 = scmp.ne.s32.totalorder %s52, %s53
      %p67 = scmp.eq.s32.totalorder %s19, 1
      %p68 = por %p66, %p67
      %p70 = scmp.ne.s32.totalorder %s53, %s69
      %p71 = scmp.eq.s32.totalorder %s19, 0
      %p72 = por %p70, %p71
      %p73 = scmp.le.s32.totalorder 1, %s13
      %p74 = scmp.lt.s32.totalorder %s13, 3
      %p75 = pnand %p73, %p74
      %p76 = pneg %p75
      // Predicated region
      $region9: #{tpu_custom_call.1} parent=5 // pred_check
        _
      $region10: #{tpu_custom_call.1} parent=5 // pred_check_branch
        %78 = sbr.rel (%p75) target = $region12
      $region11: #{tpu_custom_call.1} parent=5 // pred_region
        %s79 = ssub.s32 %s13, 1
      $region12: #{tpu_custom_call.1} parent=5 // pred_fallthru
        _
      %p80 = scmp.lt.s32.totalorder %s13, 2
      // Predicated region
      $region13: #{tpu_custom_call.1} parent=5 // pred_check
        %p81 = pneg %p80
      $region14: #{tpu_custom_call.1} parent=5 // pred_check_branch
        %83 = sbr.rel (%p81) target = $region16
      $region15: #{tpu_custom_call.1} parent=5 // pred_region
        // Predicated region
        $region17: #{tpu_custom_call.1} parent=15 // pred_check
          %p84 = pneg %p33
        $region18: #{tpu_custom_call.1} parent=15 // pred_check_branch
          %86 = sbr.rel (%p84) target = $region20
        $region19: #{tpu_custom_call.1} parent=15 // pred_region
          %s87 = sand.u32 %s23, 1
          %s88 = scalar_lea.sflag [#allocation3], %s87
          %s89 = sand.u32 %s23, 1
          %s90 = smul.addr %s89, 8
          %s91 = scalar_lea.vmem [#allocation2], %s90
          %93 = vsyncadd %s88, 0
          %s94 = smul.addr %s13, 8
          %s95 = scalar_lea.hbm %s0, %s94
          %s97 = sshll.u32 %s95, 4
          %s98 = int_to_ptr.hbm [resolvable:$true] %s97
          %s99 = sshll.u32 %s91, 4
          %s100 = int_to_ptr.vmem [resolvable:$true] %s99
          %102 = dma.hbm_to_vmem [thread:$0]  %s98, 128, %s100, %s88
        $region20: #{tpu_custom_call.1} parent=15 // pred_fallthru
          _
      $region16: #{tpu_custom_call.1} parent=5 // pred_fallthru
        _
      %p103 = scmp.le.s32.totalorder 1, %s13
      %p104 = scmp.lt.s32.totalorder %s13, 3
      %p105 = pnand %p103, %p104
      %p106 = pneg %p105
      // Predicated region
      $region21: #{tpu_custom_call.1} parent=5 // pred_check
        _
      $region22: #{tpu_custom_call.1} parent=5 // pred_check_branch
        %108 = sbr.rel (%p105) target = $region24
      $region23: #{tpu_custom_call.1} parent=5 // pred_region
        %s109 = ssub.s32 %s13, 1
        %s110 = sand.u32 %s26, 1
        %s111 = scalar_lea.sflag [#allocation3], %s110
        %s112 = sand.u32 %s26, 1
        %s113 = smul.addr %s112, 8
        %s114 = scalar_lea.vmem [#allocation2], %s113
        // Predicated region
        $region25: #{tpu_custom_call.1} parent=23 // pred_check
          %p115 = pneg %p39
        $region26: #{tpu_custom_call.1} parent=23 // pred_check_branch
          %117 = sbr.rel (%p115) target = $region28
        $region27: #{tpu_custom_call.1} parent=23 // pred_region
          %119 = dma.done %s111, 128
        $region28: #{tpu_custom_call.1} parent=23 // pred_fallthru
          _
        %s120 = sand.u32 %s26, 1
        %s121 = scalar_lea.sflag [#allocation3], %s120
        %s122 = sand.u32 %s26, 1
        %s123 = smul.addr %s122, 8
        %s124 = scalar_lea.vmem [#allocation2], %s123
        %p125 = pneg %p39
        %p126 = pneg %p36
        %p127 = pneg %p65
        %p128 = pneg %p62
        %s129 = sand.u32 %s52, 1
        %s130 = scalar_lea.sflag [#allocation4], %s129
        %s131 = sand.u32 %s52, 1
        %s132 = smul.addr %s131, 8
        %s133 = scalar_lea.vmem [#allocation5], %s132
        %v134 = vld [vmem:[%s114] sm:$0xff]
        %v135 = vadd.f32 %v134, -0.25
        %v136 = vand.u32 2147483647, %v135
        %v137 = vsub.f32 0.0, %v136
        %v138 = vmul.f32 %v137, 1.442695
        %v139 = vpow.pop %v138
        %v140 = vmul.f32 %v139, %v139
        %v141 = vmul.f32 %v139, 2.0
        %vm142 = vcmp.ge.f32.partialorder %v135, 0.0
        %v143 = vadd.f32 %v141, 1.0
        %v144 = vadd.f32 %v140, %v141
        %v145 = vsel %vm142, %v143, %v144
        %v146 = vmul.f32 %v140, 2.0
        %v147 = vsel %vm142, %v146, 2.0
        %v148 = vadd.f32 %v145, %v147
        %v149 = vrcp.pop %v148
        %v150 = vmul.f32 %v148, %v149
        %v151 = vsub.f32 1.0, %v150
        %v152 = vmul.f32 %v149, %v151
        %v153 = vadd.f32 %v149, %v152
        %vm154 = vweird.f32 %v148
        %vm155 = vweird.f32 %v149
        %vm156 = vmor %vm154, %vm155
        %v157 = vsel %vm156, %v149, %v153
        %v158 = vand.u32 2147483647, %v148
        %vm159 = vcmp.eq.f32.partialorder %v158, 8.507059e+37
        %v160 = vand.u32 %v148, 2147483648
        %v161 = vor.u32 1.1754944e-38, %v160
        %v162 = vsel %vm159, %v161, %v157
        %v163 = vmul.f32 %v145, %v162
        %v164 = vmul.f32 %v134, %v163
        %165 = vst [vmem:[%s133] sm:$0xff] %v164
        %s166 = sand.u32 %s52, 1
        %s167 = scalar_lea.sflag [#allocation4], %s166
        %s168 = sand.u32 %s52, 1
        %s169 = smul.addr %s168, 8
        %s170 = scalar_lea.vmem [#allocation5], %s169
        // Predicated region
        $region29: #{tpu_custom_call.1} parent=23 // pred_check
          %p171 = pneg %p62
        $region30: #{tpu_custom_call.1} parent=23 // pred_check_branch
          %173 = sbr.rel (%p171) target = $region32
        $region31: #{tpu_custom_call.1} parent=23 // pred_region
          %175 = vsyncadd %s167, 0
          %s176 = smul.addr %s18, 8
          %s177 = scalar_lea.hbm %s1, %s176
          %s179 = sshll.u32 %s170, 4
          %s180 = int_to_ptr.vmem [resolvable:$true] %s179
          %s181 = sshll.u32 %s177, 4
          %s182 = int_to_ptr.hbm [resolvable:$true] %s181
          %184 = dma.vmem_to_hbm [thread:$0]  %s180, 128, %s182, %s167
        $region32: #{tpu_custom_call.1} parent=23 // pred_fallthru
          _
      $region24: #{tpu_custom_call.1} parent=5 // pred_fallthru
        _
      %p185 = scmp.le.s32.totalorder 2, %s13
      // Predicated region
      $region33: #{tpu_custom_call.1} parent=5 // pred_check
        %p186 = pneg %p185
      $region34: #{tpu_custom_call.1} parent=5 // pred_check_branch
        %188 = sbr.rel (%p186) target = $region36
      $region35: #{tpu_custom_call.1} parent=5 // pred_region
        %s189 = ssub.s32 %s13, 2
        // Predicated region
        $region37: #{tpu_custom_call.1} parent=35 // pred_check
          %p190 = pneg %p68
        $region38: #{tpu_custom_call.1} parent=35 // pred_check_branch
          %192 = sbr.rel (%p190) target = $region40
        $region39: #{tpu_custom_call.1} parent=35 // pred_region
          %s193 = sand.u32 %s53, 1
          %s194 = scalar_lea.sflag [#allocation4], %s193
          %s195 = sand.u32 %s53, 1
          %s196 = smul.addr %s195, 8
          %s197 = scalar_lea.vmem [#allocation5], %s196
          %199 = dma.done %s194, 128
        $region40: #{tpu_custom_call.1} parent=35 // pred_fallthru
          _
      $region36: #{tpu_custom_call.1} parent=5 // pred_fallthru
        _
    $region6: #{tpu_custom_call.1} parent=1 // loop_footer
      %s17 = sadd.s32 1, %s13
    $region7: #{tpu_custom_call.1} parent=1 // loop_footer_branch
      %12 = sbr.rel target = $region3
    $region8: #{tpu_custom_call.1} parent=1 // loop_exit
      _
    %200 = vsyncpa [#allocation3], 1
    %s201 = scalar_lea.sflag [#allocation3], 1
    %202 = vsyncpa %s201, 1
    %203 = vsyncpa [#allocation4], 1
    %s204 = scalar_lea.sflag [#allocation4], 1
    %205 = vsyncpa %s204, 1

</llo_original>
